<compile_context>
chip_gen: v6e
topology: v6e:2x2x1
jax: 0.10.0
libtpu: 0.0.40
codegen_flags: <defaults>
</compile_context>

<pallas_src>
import jax
import jax.numpy as jnp
from jax.experimental import pallas as pl
from jax.experimental.pallas import tpu as pltpu


def _adapter_kernel(x_ref, w_ref, b_ref, o_ref):
    # x_ref : (R, S, D)   w_ref : (R, 1, D)   b_ref : (R, 1)   o_ref : (R, S)
    x = x_ref[...].astype(jnp.float32)
    w = w_ref[...].astype(jnp.float32)
    # Per-token dot product over D as VPU elementwise mul + lane reduce
    # (avoids MXU push/drain for K=32, N=1 shapes on every TPU generation).
    red = jnp.sum(x * w, axis=-1)                       # (R, S)
    out = red + b_ref[...].astype(jnp.float32)          # broadcast (R, 1) over S
    o_ref[...] = out.astype(o_ref.dtype)


def baseline_adapter(new_x, down_w, down_b, up_w, up_b):
    """new_x: (R, S, D); returns (R, S, 1) — matches Baseline.forward."""
    R, S, D = new_x.shape

    # Algebraic fusion of the two linears (exact; up_w output width is 1).
    up_vec = up_w[..., 0]                                          # (R, d)
    w_eff = jnp.einsum("rdk,rk->rd", down_w, up_vec)               # (R, D)
    b_eff = jnp.einsum("rk,rk->r", down_b, up_vec) + up_b[:, 0]    # (R,)

    out2d = pl.pallas_call(
        _adapter_kernel,
        out_shape=jax.ShapeDtypeStruct((R, S), new_x.dtype),
        in_specs=[
            pl.BlockSpec(memory_space=pltpu.MemorySpace.VMEM),  # x (whole array)
            pl.BlockSpec(memory_space=pltpu.MemorySpace.VMEM),  # w_eff
            pl.BlockSpec(memory_space=pltpu.MemorySpace.VMEM),  # b_eff
        ],
        out_specs=pl.BlockSpec(memory_space=pltpu.MemorySpace.VMEM),
    )(new_x, w_eff[:, None, :], b_eff[:, None])

    # Lane-dense (R, S) slab -> (R, S, 1) to match the PyTorch output shape.
    return out2d[..., None]


def baseline_adapter_ref(new_x, down_w, down_b, up_w, up_b):
    """Pure-JAX reference mirroring the PyTorch forward."""
    z = jnp.einsum("rsd,rdk->rsk", new_x, down_w) + down_b[:, None, :]
    val = jnp.einsum("rsk,rko->rso", z, up_w) + up_b[:, None, :]
    return val


if __name__ == "__main__":
    # Synthetic config: model_dim=32, num_routers=2, bl_reduction_factor=8
    model_dim = 32          # in_dim
    n_routers = 2
    reduction_factor = 8
    down_dim = model_dim // reduction_factor   # 4
    seq = 8

    key = jax.random.PRNGKey(0)
    k_x, k_dw, k_uw = jax.random.split(key, 3)

    # Deterministic parameter init (std=0.01 normals for weights, zeros for
    # biases), matching nn.init.normal_(std=0.01) / torch.zeros in __init__.
    new_x = jax.random.normal(k_x, (n_routers, seq, model_dim), dtype=jnp.float32)
    down_w = 0.01 * jax.random.normal(
        k_dw, (n_routers, model_dim, down_dim), dtype=jnp.float32)
    down_b = jnp.zeros((n_routers, down_dim), dtype=jnp.float32)
    up_w = 0.01 * jax.random.normal(k_uw, (n_routers, down_dim, 1), dtype=jnp.float32)
    up_b = jnp.zeros((n_routers, 1), dtype=jnp.float32)

    out = baseline_adapter(new_x, down_w, down_b, up_w, up_b)
    out = jax.block_until_ready(out)

    ref = baseline_adapter_ref(new_x, down_w, down_b, up_w, up_b)
    assert out.shape == (n_routers, seq, 1), out.shape
    # Fused form (x @ (Wd@Wu) + bd@Wu + bu) is mathematically identical; only
    # ~1e-7-level rounding differences vs. the two-matmul reference.
    assert jnp.allclose(out, ref, atol=1e-5, rtol=1e-5), "mismatch vs reference"

    print("KERNEL_OK")
</pallas_src>

<mosaic_0001>
module attributes {stable_mosaic.version = 11 : i64} {
  func.func @_adapter_kernel(%arg0: memref<2x8x32xf32, #tpu.memory_space<vmem>>, %arg1: memref<2x1x32xf32, #tpu.memory_space<vmem>>, %arg2: memref<2x1xf32, #tpu.memory_space<vmem>>, %arg3: memref<2x8xf32, #tpu.memory_space<vmem>>) attributes {dimension_semantics = [], scalar_prefetch = 0 : i64, scratch_operands = 0 : i64, tpu.core_type = #tpu.core_type<tc>} {
    %c0 = arith.constant 0 : index
    %c0_0 = arith.constant 0 : index
    %c0_1 = arith.constant 0 : index
    %0 = vector.load %arg0[%c0, %c0_0, %c0_1] : memref<2x8x32xf32, #tpu.memory_space<vmem>>, vector<2x8x32xf32>
    %c0_2 = arith.constant 0 : index
    %c0_3 = arith.constant 0 : index
    %c0_4 = arith.constant 0 : index
    %1 = vector.load %arg1[%c0_2, %c0_3, %c0_4] : memref<2x1x32xf32, #tpu.memory_space<vmem>>, vector<2x1x32xf32>
    %2 = vector.broadcast %1 : vector<2x1x32xf32> to vector<2x8x32xf32>
    %3 = arith.mulf %0, %2 : vector<2x8x32xf32>
    %cst = arith.constant dense<0.000000e+00> : vector<2x8xf32>
    %4 = vector.multi_reduction <add>, %3, %cst [2] : vector<2x8x32xf32> to vector<2x8xf32>
    %c0_5 = arith.constant 0 : index
    %c0_6 = arith.constant 0 : index
    %5 = vector.load %arg2[%c0_5, %c0_6] : memref<2x1xf32, #tpu.memory_space<vmem>>, vector<2x1xf32>
    %6 = vector.broadcast %5 : vector<2x1xf32> to vector<2x8xf32>
    %7 = arith.addf %4, %6 : vector<2x8xf32>
    %c0_7 = arith.constant 0 : index
    %c0_8 = arith.constant 0 : index
    %8 = vector.load %arg3[%c0_7, %c0_8] : memref<2x8xf32, #tpu.memory_space<vmem>>, vector<2x8xf32>
    tpu.vector_store %arg3[%c0_7, %c0_8], %7 {strides = array<i32>} : memref<2x8xf32, #tpu.memory_space<vmem>>, vector<2x8xf32>,
    return
  }
}

</mosaic_0001>

<llo_original>
// kernel: tpu_custom_call.1
$region0: #{tpu_custom_call.1}
  #allocation0 [shape = 'u32[]', space=smem, size = 0x4, offset = 0x4, fixed_abs, tag = 'smem constant byte address 0x4 - core index']
  #allocation1 [shape = 'u32[144,128]{1,0:T(1,128)}', space=vmem, size = 0x12000, scoped, tag = 'internal scratch']
  %s0 = inlined_call_operand.hbm [shape: f32[2,8,32], index: 0, kind: input, shape index: {}]
  %s1 = inlined_call_operand.vmem [shape: f32[2,1,32], index: 1, kind: input, shape index: {}]
  %s2 = inlined_call_operand.vmem [shape: f32[2,1], index: 2, kind: input, shape index: {}]
  %s3 = inlined_call_operand.hbm [shape: f32[2,8], index: 3, kind: output, shape index: {}]
  %s4 = sld [smem:[#allocation0]]
  $region26: #{tpu_custom_call.1} parent=0
    _
  %s6 = ssub.s32 1, %s4
  %s7 = scalar_select 0, %s6, %s4
  $region1: #{tpu_custom_call.1} parent=0
    #allocation2 [shape = 'u8[8192]{0}', space=vmem, size = 0x2000, scoped, tag = 'input window, operand 0, single buffered']
    #allocation3 [shape = 's32[1]{0}', space=sflag, size = 0x4, scoped, tag = 'scoped memory for tpu_custom_call.1']
    #allocation4 [shape = 's32[1]{0}', space=sflag, size = 0x4, scoped, tag = 'scoped memory for tpu_custom_call.1']
    #allocation5 [shape = 'u8[1024]{0}', space=vmem, size = 0x400, scoped, tag = 'output window, operand 0, single buffered']
    %8 = vsyncpa [#allocation3], 0
    %9 = vsyncpa [#allocation4], 0
    // Predicated region
    $region2: #{tpu_custom_call.1} parent=1 // pred_check
      _
    $region3: #{tpu_custom_call.1} parent=1 // pred_check_branch
      %11 = sbr.rel (0) target = $region5
    $region4: #{tpu_custom_call.1} parent=1 // pred_region
      %s13 = ssub.s32 256, 256
      %14 = vsyncadd [#allocation3], %s13
      %s15 = sshll.u32 [#allocation2], 4
      %s16 = int_to_ptr.vmem [resolvable:$true] %s15
      %21 = dma.hbm_to_vmem [thread:$0]  %s0, 256, %s16, [#allocation3], 128, 128, 8
    $region5: #{tpu_custom_call.1} parent=1 // pred_fallthru
      _
    // Predicated region
    $region6: #{tpu_custom_call.1} parent=1 // pred_check
      _
    $region7: #{tpu_custom_call.1} parent=1 // pred_check_branch
      %23 = sbr.rel (0) target = $region9
    $region8: #{tpu_custom_call.1} parent=1 // pred_region
      _
    $region9: #{tpu_custom_call.1} parent=1 // pred_fallthru
      _
    // Predicated region
    $region10: #{tpu_custom_call.1} parent=1 // pred_check
      _
    $region11: #{tpu_custom_call.1} parent=1 // pred_check_branch
      %25 = sbr.rel (0) target = $region13
    $region12: #{tpu_custom_call.1} parent=1 // pred_region
      _
    $region13: #{tpu_custom_call.1} parent=1 // pred_fallthru
      _
    // Predicated region
    $region14: #{tpu_custom_call.1} parent=1 // pred_check
      _
    $region15: #{tpu_custom_call.1} parent=1 // pred_check_branch
      %27 = sbr.rel (0) target = $region17
    $region16: #{tpu_custom_call.1} parent=1 // pred_region
      %28 = dma.done [#allocation3], 256
    $region17: #{tpu_custom_call.1} parent=1 // pred_fallthru
      _
    %v29 = vld [vmem:[#allocation2] sm:$0xff]
    %v30 = vld [vmem:[#allocation2 + $0x8] sm:$0xff]
    %v31 = vld [vmem:[%s1] sm:$0x1]
    %v32 = vld [vmem:[%s1 + $0x1] sm:$0x1]
    %v35 = vlaneseq
    %v36 = vshrl.u32 %v35, 7
    %v37 = vsub.s32 0, %v36
    %v38 = vrot.slane %v31, %v37
    %v39 = vlaneseq
    %v40 = vshrl.u32 %v39, 7
    %v41 = vsub.s32 0, %v40
    %v42 = vrot.slane %v32, %v41
    %v45 = vmul.f32 %v29, %v38
    %v46 = vmul.f32 %v30, %v42
    %vm47 = vcmask 261120
    %v48 = vsel %vm47, %v45, 0.0
    %49 = vadd.xlane.f32.xlu0 %v48
    %v50 = vpop.xlane.xlu0 %49
    %v51 = vsel %vm47, %v46, 0.0
    %52 = vadd.xlane.f32.xlu0 %v51
    %v53 = vpop.xlane.xlu0 %52
    %v54 = vld [vmem:[%s2] sm:$0x3]
    %56 = vset.pattern.permute.xlu0 0
    %57 = vperm.xlu0 %56, %v54
    %v58 = vpop.permute.xlu0 %57
    %v59 = vlaneseq
    %v60 = vshrl.u32 %v59, 7
    %v61 = vsub.s32 0, %v60
    %v62 = vrot.slane %v58, %v61
    %v63 = vlaneseq
    %v64 = vshrl.u32 %v63, 7
    %v65 = vsub.s32 1, %v64
    %v66 = vrot.slane %v58, %v65
    %v69 = vadd.f32 %v50, %v62
    %v70 = vadd.f32 %v53, %v66
    %73 = vset.pattern.permute.xlu0 0
    %74 = vperm.xlu0 %73, %v69
    %v75 = vpop.permute.xlu0 %74
    %76 = vset.pattern.permute.xlu0 0
    %77 = vperm.xlu0 %76, %v70
    %v78 = vpop.permute.xlu0 %77
    %v79 = vlaneseq
    %v80 = vand.u32 %v79, 127
    %v81 = vlaneseq
    %v82 = vshrl.u32 %v81, 7
    %v83 = vsub.s32 %v80, %v82
    %v84 = vrot.slane %v75, %v83
    %v85 = vlaneseq
    %v86 = vshrl.u32 %v85, 7
    %v87 = vsub.s32 %v80, %v86
    %v88 = vrot.slane %v78, %v87
    %vm89 = vcmask 1041409
    %v90 = vsel %vm89, %v88, %v84
    %vm92 = vcmask 58368
    %93 = vst.msk [vmem:[#allocation5] sm:$0x3] %vm92, %v90
    // Predicated region
    $region18: #{tpu_custom_call.1} parent=1 // pred_check
      _
    $region19: #{tpu_custom_call.1} parent=1 // pred_check_branch
      %95 = sbr.rel (0) target = $region21
    $region20: #{tpu_custom_call.1} parent=1 // pred_region
      %s97 = ssub.s32 32, 32
      %98 = vsyncadd [#allocation4], %s97
      %s100 = sshll.u32 [#allocation5], 4
      %s101 = int_to_ptr.vmem [resolvable:$true] %s100
      %103 = dma.vmem_to_hbm [thread:$0]  %s101, 32, %s3, [#allocation4]
    $region21: #{tpu_custom_call.1} parent=1 // pred_fallthru
      _
    // Predicated region
    $region22: #{tpu_custom_call.1} parent=1 // pred_check
      _
    $region23: #{tpu_custom_call.1} parent=1 // pred_check_branch
      %105 = sbr.rel (0) target = $region25
    $region24: #{tpu_custom_call.1} parent=1 // pred_region
      %106 = dma.done [#allocation4], 32
    $region25: #{tpu_custom_call.1} parent=1 // pred_fallthru
      _
    %107 = vsyncpa [#allocation3], 1
    %108 = vsyncpa [#allocation4], 1

</llo_original>
